<compile_context>
chip_gen: v7x
topology: tpu7x:2x2x1
jax: 0.10.0
libtpu: 0.0.40
codegen_flags: <defaults>
</compile_context>

<pallas_src>
import jax
import jax.numpy as jnp
from jax.experimental import pallas as pl
from jax.experimental.pallas import tpu as pltpu

IN_OUT = 40                   # input feature dim (40 MFCC features)
HID = int(IN_OUT * 1.4)       # 56
HID_PAD = 128                 # lane-aligned hidden dim (zero padded)
OUT = 346                     # fixed by the module
OUT_PAD = 384                 # 3 * 128, lane-dense output stores
N_BLOCKS = 7                  # number of (Linear, ReLU, BatchNorm1d) blocks
EPS = 1e-5                    # BatchNorm1d default eps


def _round_up(x, m):
    return ((x + m - 1) // m) * m


def _num_tensorcores():
    """Best-effort query of TensorCores per chip (v7x=2, v5e/v6e=1).
    Defaults to 1 (never splits the grid) if the info is unavailable."""
    try:
        info = pltpu.get_tpu_info()
        for name in ("num_cores", "core_count", "tensorcore_count",
                     "num_tensorcores", "cores_per_chip"):
            v = getattr(info, name, None)
            if isinstance(v, int) and v > 0:
                return v
    except Exception:
        pass
    try:
        v = getattr(jax.devices()[0], "num_cores", None)
        if isinstance(v, int) and v > 0:
            return v
    except Exception:
        pass
    return 1


def mlp_kernel(x_ref, w_in_ref, b_in_ref, w_hid_ref, b_hid_ref,
               w_out_ref, b_out_ref, o_ref):
    # block 0: Linear(40 -> 56, padded to 128) + ReLU  (its BN folded into next Linear)
    h = jnp.dot(x_ref[...].astype(jnp.bfloat16), w_in_ref[...],
                preferred_element_type=jnp.float32)
    h = jnp.maximum(h + b_in_ref[...], 0.0)
    # blocks 1..6: BN-folded Linear(128 -> 128) + ReLU, statically unrolled
    for j in range(N_BLOCKS - 1):
        h = jnp.dot(h.astype(jnp.bfloat16), w_hid_ref[j],
                    preferred_element_type=jnp.float32)
        h = jnp.maximum(h + b_hid_ref[j:j + 1, :], 0.0)
    # final BN-folded Linear(128 -> 384); columns 346..383 are exact zeros
    out = jnp.dot(h.astype(jnp.bfloat16), w_out_ref[...],
                  preferred_element_type=jnp.float32) + b_out_ref[...]
    o_ref[...] = out.astype(o_ref.dtype)


def mlp_forward(x, params, *, max_bm=2048, trim=True):
    """x: (n, 40) float32.  Returns (n, 346) float32 (module semantics) when
    trim=True, else the padded (n_pad, 384) slab (padded columns are exact 0)."""
    w_in, b_in, w_hid, b_hid, w_out, b_out = params
    n = x.shape[0]
    n_tc = _num_tensorcores()

    # One big batch tile per grid step (fills MXU, amortizes ~0.35us/step).
    bm = min(max_bm, _round_up(n, 8))
    # Only force a multi-tile split when the chip actually has >1 TensorCore
    # (v7x); on single-TC v5e/v6e an extra grid step is pure overhead.
    if n_tc > 1 and n >= 256 and pl.cdiv(n, bm) < n_tc:
        bm = min(bm, _round_up(pl.cdiv(n, n_tc), 128))   # keep M tiles 128-aligned
    n_pad = _round_up(n, bm)
    if n_pad != n:
        x = jnp.pad(x, ((0, n_pad - n), (0, 0)))
    grid = (n_pad // bm,)

    # Advisory cost estimate so XLA schedules/overlaps this tiny call sensibly.
    flops = 2 * n_pad * (IN_OUT * HID_PAD
                         + (N_BLOCKS - 1) * HID_PAD * HID_PAD
                         + HID_PAD * OUT_PAD)
    w_bytes = (int(w_in.size) + int(w_hid.size) + int(w_out.size)) * 2 \
              + (int(b_in.size) + int(b_hid.size) + int(b_out.size)) * 4
    bytes_accessed = n_pad * IN_OUT * 4 + n_pad * OUT_PAD * 4 + w_bytes

    def rep(ndim):
        return lambda i: (0,) * ndim

    out = pl.pallas_call(
        mlp_kernel,
        out_shape=jax.ShapeDtypeStruct((n_pad, OUT_PAD), jnp.float32),
        grid_spec=pltpu.PrefetchScalarGridSpec(
            num_scalar_prefetch=0,
            grid=grid,
            in_specs=[
                pl.BlockSpec((bm, IN_OUT), lambda i: (i, 0)),            # x tile
                pl.BlockSpec((IN_OUT, HID_PAD), rep(2)),                 # w_in (bf16, resident)
                pl.BlockSpec((1, HID_PAD), rep(2)),                      # b_in (f32)
                pl.BlockSpec((N_BLOCKS - 1, HID_PAD, HID_PAD), rep(3)),  # folded w_hid (bf16)
                pl.BlockSpec((N_BLOCKS - 1, HID_PAD), rep(2)),           # folded b_hid (f32)
                pl.BlockSpec((HID_PAD, OUT_PAD), rep(2)),                # folded w_out (bf16)
                pl.BlockSpec((1, OUT_PAD), rep(2)),                      # folded b_out (f32)
            ],
            out_specs=pl.BlockSpec((bm, OUT_PAD), lambda i: (i, 0)),
        ),
        compiler_params=pltpu.CompilerParams(
            dimension_semantics=("parallel",)),
        cost_estimate=pl.CostEstimate(flops=flops, transcendentals=0,
                                      bytes_accessed=bytes_accessed),
    )(x, w_in, b_in, w_hid, b_hid, w_out, b_out)

    if not trim:
        return out                       # skip the extra column-slice copy
    return out[:n, :OUT]


def init_raw_params(key):
    """Raw module parameters (PyTorch semantics): 8 Linears (stored [in, out])
    + 7 BatchNorm1d(eval) parameter sets."""
    dims = [IN_OUT] + [HID] * N_BLOCKS + [OUT]
    n_lin = len(dims) - 1
    keys = jax.random.split(key, 2 * n_lin + 4)
    Ws, bs = [], []
    for i in range(n_lin):
        fan_in, fan_out = dims[i], dims[i + 1]
        bound = 1.0 / jnp.sqrt(fan_in)
        Ws.append(jax.random.uniform(keys[2 * i], (fan_in, fan_out),
                                     jnp.float32, -bound, bound))
        bs.append(jax.random.uniform(keys[2 * i + 1], (fan_out,),
                                     jnp.float32, -bound, bound))
    kg, kb, km, kv = keys[2 * n_lin:]
    gamma = jax.random.uniform(kg, (N_BLOCKS, HID), jnp.float32, 0.5, 1.5)
    beta = 0.1 * jax.random.normal(kb, (N_BLOCKS, HID), jnp.float32)
    mean = 0.1 * jax.random.normal(km, (N_BLOCKS, HID), jnp.float32)
    var = jax.random.uniform(kv, (N_BLOCKS, HID), jnp.float32, 0.5, 1.5)
    return Ws, bs, gamma, beta, mean, var


def prepare_params(raw, *, weight_dtype=jnp.bfloat16):
    """Fold each BatchNorm into the following Linear, zero-pad to lane-aligned
    shapes (HID->128, OUT->384) and cast weights to bf16 (biases stay f32)."""
    Ws, bs, gamma, beta, mean, var = raw
    scale = gamma / jnp.sqrt(var + EPS)          # (7, 56)
    shift = beta - mean * scale                  # (7, 56)

    def pad2(a, r, c):
        return jnp.pad(a, ((0, r - a.shape[0]), (0, c - a.shape[1])))

    w_in = pad2(Ws[0], IN_OUT, HID_PAD).astype(weight_dtype)    # (40, 128)
    b_in = pad2(bs[0][None, :], 1, HID_PAD)                     # (1, 128) f32

    w_hid, b_hid = [], []
    for j in range(N_BLOCKS - 1):                               # BN_j -> Linear_{j+1}
        Wf = scale[j][:, None] * Ws[j + 1]
        bf = bs[j + 1] + shift[j] @ Ws[j + 1]
        w_hid.append(pad2(Wf, HID_PAD, HID_PAD))
        b_hid.append(jnp.pad(bf, (0, HID_PAD - HID)))
    w_hid = jnp.stack(w_hid).astype(weight_dtype)               # (6, 128, 128)
    b_hid = jnp.stack(b_hid)                                    # (6, 128) f32

    Wf = scale[N_BLOCKS - 1][:, None] * Ws[-1]                  # BN_6 -> final Linear
    bf = bs[-1] + shift[N_BLOCKS - 1] @ Ws[-1]
    w_out = pad2(Wf, HID_PAD, OUT_PAD).astype(weight_dtype)     # (128, 384)
    b_out = pad2(bf[None, :], 1, OUT_PAD)                       # (1, 384) f32
    return w_in, b_in, w_hid, b_hid, w_out, b_out


def reference_forward(x, raw):
    """Pure-JAX f32 reference with the exact module semantics (unfolded, unpadded)."""
    Ws, bs, gamma, beta, mean, var = raw
    h = x
    for i in range(N_BLOCKS):
        h = jnp.maximum(h @ Ws[i] + bs[i], 0.0)
        h = (h - mean[i]) / jnp.sqrt(var[i] + EPS) * gamma[i] + beta[i]
    return h @ Ws[-1] + bs[-1]


def reference_mixed(x, params):
    """Pure-JAX reference with the SAME folded/padded bf16 weights & precision
    as the kernel (validates padding/folding/BlockSpec plumbing tightly)."""
    w_in, b_in, w_hid, b_hid, w_out, b_out = params
    h = jnp.dot(x.astype(w_in.dtype), w_in, preferred_element_type=jnp.float32)
    h = jnp.maximum(h + b_in, 0.0)
    for j in range(N_BLOCKS - 1):
        h = jnp.dot(h.astype(w_hid.dtype), w_hid[j],
                    preferred_element_type=jnp.float32)
        h = jnp.maximum(h + b_hid[j][None, :], 0.0)
    out = jnp.dot(h.astype(w_out.dtype), w_out,
                  preferred_element_type=jnp.float32) + b_out
    return out[:, :OUT]


if __name__ == "__main__":
    key = jax.random.PRNGKey(0)
    kx, kp = jax.random.split(key)
    batch = 16
    x = jax.random.normal(kx, (batch, IN_OUT), jnp.float32)

    raw = init_raw_params(kp)
    params = prepare_params(raw)

    out = jax.block_until_ready(mlp_forward(x, params))
    assert out.shape == (batch, OUT)

    ref_mixed = reference_mixed(x, params)           # same bf16/f32 precision
    ref_exact = reference_forward(x, raw)            # exact f32 module semantics
    err_mixed = float(jnp.max(jnp.abs(out - ref_mixed)))
    err_exact = float(jnp.max(jnp.abs(out - ref_exact)))
    assert jnp.allclose(out, ref_mixed, atol=1e-2, rtol=1e-2), err_mixed
    assert jnp.allclose(out, ref_exact, atol=1e-1, rtol=1e-1), err_exact
    print("KERNEL_OK")
</pallas_src>

<mosaic_0001>
module attributes {stable_mosaic.version = 11 : i64} {
  func.func @mlp_kernel(%arg0: i32, %arg1: memref<16x40xf32, #tpu.memory_space<vmem>>, %arg2: memref<40x128xbf16, #tpu.memory_space<vmem>>, %arg3: memref<1x128xf32, #tpu.memory_space<vmem>>, %arg4: memref<6x128x128xbf16, #tpu.memory_space<vmem>>, %arg5: memref<6x128xf32, #tpu.memory_space<vmem>>, %arg6: memref<128x384xbf16, #tpu.memory_space<vmem>>, %arg7: memref<1x384xf32, #tpu.memory_space<vmem>>, %arg8: memref<16x384xf32, #tpu.memory_space<vmem>>) attributes {dimension_semantics = [#tpu.dimension_semantics<parallel>], iteration_bounds = array<i64: 1>, scalar_prefetch = 0 : i64, scratch_operands = 0 : i64, tpu.core_type = #tpu.core_type<tc>, window_params = [{transform_indices = @transform_0, window_bounds = array<i64: 16, 40>}, {pipeline_mode = #tpu.pipeline_mode<synchronous>, transform_indices = @transform_1, window_bounds = array<i64: 40, 128>}, {pipeline_mode = #tpu.pipeline_mode<synchronous>, transform_indices = @transform_2, window_bounds = array<i64: 1, 128>}, {pipeline_mode = #tpu.pipeline_mode<synchronous>, transform_indices = @transform_3, window_bounds = array<i64: 6, 128, 128>}, {pipeline_mode = #tpu.pipeline_mode<synchronous>, transform_indices = @transform_4, window_bounds = array<i64: 6, 128>}, {pipeline_mode = #tpu.pipeline_mode<synchronous>, transform_indices = @transform_5, window_bounds = array<i64: 128, 384>}, {pipeline_mode = #tpu.pipeline_mode<synchronous>, transform_indices = @transform_6, window_bounds = array<i64: 1, 384>}, {transform_indices = @transform_7, window_bounds = array<i64: 16, 384>}]} {
    %c0 = arith.constant 0 : index
    %c0_0 = arith.constant 0 : index
    %0 = vector.load %arg1[%c0, %c0_0] : memref<16x40xf32, #tpu.memory_space<vmem>>, vector<16x40xf32>
    %1 = arith.truncf %0 : vector<16x40xf32> to vector<16x40xbf16>
    %c0_1 = arith.constant 0 : index
    %c0_2 = arith.constant 0 : index
    %2 = vector.load %arg2[%c0_1, %c0_2] : memref<40x128xbf16, #tpu.memory_space<vmem>>, vector<40x128xbf16>
    %cst = arith.constant dense<0.000000e+00> : vector<16x128xf32>
    %3 = tpu.matmul %1, %2, %cst {dimension_numbers = #tpu.dot_dimension_numbers<[1], [0], [0], [1], [0, 0, 1, 1], [], []>} : vector<16x40xbf16>, vector<40x128xbf16>, vector<16x128xf32> -> vector<16x128xf32>
    %c0_3 = arith.constant 0 : index
    %c0_4 = arith.constant 0 : index
    %4 = vector.load %arg3[%c0_3, %c0_4] : memref<1x128xf32, #tpu.memory_space<vmem>>, vector<1x128xf32>
    %5 = vector.broadcast %4 : vector<1x128xf32> to vector<16x128xf32>
    %6 = arith.addf %3, %5 : vector<16x128xf32>
    %cst_5 = arith.constant 0.000000e+00 : f32
    %7 = vector.broadcast %cst_5 : f32 to vector<16x128xf32>
    %8 = arith.maximumf %6, %7 : vector<16x128xf32>
    %9 = arith.truncf %8 : vector<16x128xf32> to vector<16x128xbf16>
    %c0_6 = arith.constant 0 : index
    %c0_7 = arith.constant 0 : index
    %c0_8 = arith.constant 0 : index
    %10 = vector.load %arg4[%c0_6, %c0_7, %c0_8] : memref<6x128x128xbf16, #tpu.memory_space<vmem>>, vector<1x128x128xbf16>
    %11 = vector.shape_cast %10 : vector<1x128x128xbf16> to vector<128x128xbf16>
    %cst_9 = arith.constant dense<0.000000e+00> : vector<16x128xf32>
    %12 = tpu.matmul %9, %11, %cst_9 {dimension_numbers = #tpu.dot_dimension_numbers<[1], [0], [0], [1], [0, 0, 1, 1], [], []>} : vector<16x128xbf16>, vector<128x128xbf16>, vector<16x128xf32> -> vector<16x128xf32>
    %c0_10 = arith.constant 0 : index
    %c0_11 = arith.constant 0 : index
    %13 = vector.load %arg5[%c0_10, %c0_11] : memref<6x128xf32, #tpu.memory_space<vmem>>, vector<1x128xf32>
    %14 = vector.broadcast %13 : vector<1x128xf32> to vector<16x128xf32>
    %15 = arith.addf %12, %14 : vector<16x128xf32>
    %cst_12 = arith.constant 0.000000e+00 : f32
    %16 = vector.broadcast %cst_12 : f32 to vector<16x128xf32>
    %17 = arith.maximumf %15, %16 : vector<16x128xf32>
    %18 = arith.truncf %17 : vector<16x128xf32> to vector<16x128xbf16>
    %c1 = arith.constant 1 : index
    %c0_13 = arith.constant 0 : index
    %c0_14 = arith.constant 0 : index
    %19 = vector.load %arg4[%c1, %c0_13, %c0_14] : memref<6x128x128xbf16, #tpu.memory_space<vmem>>, vector<1x128x128xbf16>
    %20 = vector.shape_cast %19 : vector<1x128x128xbf16> to vector<128x128xbf16>
    %cst_15 = arith.constant dense<0.000000e+00> : vector<16x128xf32>
    %21 = tpu.matmul %18, %20, %cst_15 {dimension_numbers = #tpu.dot_dimension_numbers<[1], [0], [0], [1], [0, 0, 1, 1], [], []>} : vector<16x128xbf16>, vector<128x128xbf16>, vector<16x128xf32> -> vector<16x128xf32>
    %c1_16 = arith.constant 1 : index
    %c0_17 = arith.constant 0 : index
    %22 = vector.load %arg5[%c1_16, %c0_17] : memref<6x128xf32, #tpu.memory_space<vmem>>, vector<1x128xf32>
    %23 = vector.broadcast %22 : vector<1x128xf32> to vector<16x128xf32>
    %24 = arith.addf %21, %23 : vector<16x128xf32>
    %cst_18 = arith.constant 0.000000e+00 : f32
    %25 = vector.broadcast %cst_18 : f32 to vector<16x128xf32>
    %26 = arith.maximumf %24, %25 : vector<16x128xf32>
    %27 = arith.truncf %26 : vector<16x128xf32> to vector<16x128xbf16>
    %c2 = arith.constant 2 : index
    %c0_19 = arith.constant 0 : index
    %c0_20 = arith.constant 0 : index
    %28 = vector.load %arg4[%c2, %c0_19, %c0_20] : memref<6x128x128xbf16, #tpu.memory_space<vmem>>, vector<1x128x128xbf16>
    %29 = vector.shape_cast %28 : vector<1x128x128xbf16> to vector<128x128xbf16>
    %cst_21 = arith.constant dense<0.000000e+00> : vector<16x128xf32>
    %30 = tpu.matmul %27, %29, %cst_21 {dimension_numbers = #tpu.dot_dimension_numbers<[1], [0], [0], [1], [0, 0, 1, 1], [], []>} : vector<16x128xbf16>, vector<128x128xbf16>, vector<16x128xf32> -> vector<16x128xf32>
    %c2_22 = arith.constant 2 : index
    %c0_23 = arith.constant 0 : index
    %31 = vector.load %arg5[%c2_22, %c0_23] : memref<6x128xf32, #tpu.memory_space<vmem>>, vector<1x128xf32>
    %32 = vector.broadcast %31 : vector<1x128xf32> to vector<16x128xf32>
    %33 = arith.addf %30, %32 : vector<16x128xf32>
    %cst_24 = arith.constant 0.000000e+00 : f32
    %34 = vector.broadcast %cst_24 : f32 to vector<16x128xf32>
    %35 = arith.maximumf %33, %34 : vector<16x128xf32>
    %36 = arith.truncf %35 : vector<16x128xf32> to vector<16x128xbf16>
    %c3 = arith.constant 3 : index
    %c0_25 = arith.constant 0 : index
    %c0_26 = arith.constant 0 : index
    %37 = vector.load %arg4[%c3, %c0_25, %c0_26] : memref<6x128x128xbf16, #tpu.memory_space<vmem>>, vector<1x128x128xbf16>
    %38 = vector.shape_cast %37 : vector<1x128x128xbf16> to vector<128x128xbf16>
    %cst_27 = arith.constant dense<0.000000e+00> : vector<16x128xf32>
    %39 = tpu.matmul %36, %38, %cst_27 {dimension_numbers = #tpu.dot_dimension_numbers<[1], [0], [0], [1], [0, 0, 1, 1], [], []>} : vector<16x128xbf16>, vector<128x128xbf16>, vector<16x128xf32> -> vector<16x128xf32>
    %c3_28 = arith.constant 3 : index
    %c0_29 = arith.constant 0 : index
    %40 = vector.load %arg5[%c3_28, %c0_29] : memref<6x128xf32, #tpu.memory_space<vmem>>, vector<1x128xf32>
    %41 = vector.broadcast %40 : vector<1x128xf32> to vector<16x128xf32>
    %42 = arith.addf %39, %41 : vector<16x128xf32>
    %cst_30 = arith.constant 0.000000e+00 : f32
    %43 = vector.broadcast %cst_30 : f32 to vector<16x128xf32>
    %44 = arith.maximumf %42, %43 : vector<16x128xf32>
    %45 = arith.truncf %44 : vector<16x128xf32> to vector<16x128xbf16>
    %c4 = arith.constant 4 : index
    %c0_31 = arith.constant 0 : index
    %c0_32 = arith.constant 0 : index
    %46 = vector.load %arg4[%c4, %c0_31, %c0_32] : memref<6x128x128xbf16, #tpu.memory_space<vmem>>, vector<1x128x128xbf16>
    %47 = vector.shape_cast %46 : vector<1x128x128xbf16> to vector<128x128xbf16>
    %cst_33 = arith.constant dense<0.000000e+00> : vector<16x128xf32>
    %48 = tpu.matmul %45, %47, %cst_33 {dimension_numbers = #tpu.dot_dimension_numbers<[1], [0], [0], [1], [0, 0, 1, 1], [], []>} : vector<16x128xbf16>, vector<128x128xbf16>, vector<16x128xf32> -> vector<16x128xf32>
    %c4_34 = arith.constant 4 : index
    %c0_35 = arith.constant 0 : index
    %49 = vector.load %arg5[%c4_34, %c0_35] : memref<6x128xf32, #tpu.memory_space<vmem>>, vector<1x128xf32>
    %50 = vector.broadcast %49 : vector<1x128xf32> to vector<16x128xf32>
    %51 = arith.addf %48, %50 : vector<16x128xf32>
    %cst_36 = arith.constant 0.000000e+00 : f32
    %52 = vector.broadcast %cst_36 : f32 to vector<16x128xf32>
    %53 = arith.maximumf %51, %52 : vector<16x128xf32>
    %54 = arith.truncf %53 : vector<16x128xf32> to vector<16x128xbf16>
    %c5 = arith.constant 5 : index
    %c0_37 = arith.constant 0 : index
    %c0_38 = arith.constant 0 : index
    %55 = vector.load %arg4[%c5, %c0_37, %c0_38] : memref<6x128x128xbf16, #tpu.memory_space<vmem>>, vector<1x128x128xbf16>
    %56 = vector.shape_cast %55 : vector<1x128x128xbf16> to vector<128x128xbf16>
    %cst_39 = arith.constant dense<0.000000e+00> : vector<16x128xf32>
    %57 = tpu.matmul %54, %56, %cst_39 {dimension_numbers = #tpu.dot_dimension_numbers<[1], [0], [0], [1], [0, 0, 1, 1], [], []>} : vector<16x128xbf16>, vector<128x128xbf16>, vector<16x128xf32> -> vector<16x128xf32>
    %c5_40 = arith.constant 5 : index
    %c0_41 = arith.constant 0 : index
    %58 = vector.load %arg5[%c5_40, %c0_41] : memref<6x128xf32, #tpu.memory_space<vmem>>, vector<1x128xf32>
    %59 = vector.broadcast %58 : vector<1x128xf32> to vector<16x128xf32>
    %60 = arith.addf %57, %59 : vector<16x128xf32>
    %cst_42 = arith.constant 0.000000e+00 : f32
    %61 = vector.broadcast %cst_42 : f32 to vector<16x128xf32>
    %62 = arith.maximumf %60, %61 : vector<16x128xf32>
    %63 = arith.truncf %62 : vector<16x128xf32> to vector<16x128xbf16>
    %c0_43 = arith.constant 0 : index
    %c0_44 = arith.constant 0 : index
    %64 = vector.load %arg6[%c0_43, %c0_44] : memref<128x384xbf16, #tpu.memory_space<vmem>>, vector<128x384xbf16>
    %cst_45 = arith.constant dense<0.000000e+00> : vector<16x384xf32>
    %65 = tpu.matmul %63, %64, %cst_45 {dimension_numbers = #tpu.dot_dimension_numbers<[1], [0], [0], [1], [0, 0, 1, 1], [], []>} : vector<16x128xbf16>, vector<128x384xbf16>, vector<16x384xf32> -> vector<16x384xf32>
    %c0_46 = arith.constant 0 : index
    %c0_47 = arith.constant 0 : index
    %66 = vector.load %arg7[%c0_46, %c0_47] : memref<1x384xf32, #tpu.memory_space<vmem>>, vector<1x384xf32>
    %67 = vector.broadcast %66 : vector<1x384xf32> to vector<16x384xf32>
    %68 = arith.addf %65, %67 : vector<16x384xf32>
    %c0_48 = arith.constant 0 : index
    %c0_49 = arith.constant 0 : index
    %69 = vector.load %arg8[%c0_48, %c0_49] : memref<16x384xf32, #tpu.memory_space<vmem>>, vector<16x384xf32>
    tpu.vector_store %arg8[%c0_48, %c0_49], %68 {strides = array<i32>} : memref<16x384xf32, #tpu.memory_space<vmem>>, vector<16x384xf32>,
    return
  }
  func.func @transform_0(%arg0: i32) -> (i32, i32) {
    %c0_i32 = arith.constant 0 : i32
    %c0_i32_0 = arith.constant 0 : i32
    return %arg0, %c0_i32 : i32, i32
  }
  func.func @transform_1(%arg0: i32) -> (i32, i32) {
    %c0_i32 = arith.constant 0 : i32
    %c0_i32_0 = arith.constant 0 : i32
    %c0_i32_1 = arith.constant 0 : i32
    return %c0_i32, %c0_i32_0 : i32, i32
  }
  func.func @transform_2(%arg0: i32) -> (i32, i32) {
    %c0_i32 = arith.constant 0 : i32
    %c0_i32_0 = arith.constant 0 : i32
    %c0_i32_1 = arith.constant 0 : i32
    return %c0_i32, %c0_i32_0 : i32, i32
  }
  func.func @transform_3(%arg0: i32) -> (i32, i32, i32) {
    %c0_i32 = arith.constant 0 : i32
    %c0_i32_0 = arith.constant 0 : i32
    %c0_i32_1 = arith.constant 0 : i32
    %c0_i32_2 = arith.constant 0 : i32
    return %c0_i32, %c0_i32_0, %c0_i32_1 : i32, i32, i32
  }
  func.func @transform_4(%arg0: i32) -> (i32, i32) {
    %c0_i32 = arith.constant 0 : i32
    %c0_i32_0 = arith.constant 0 : i32
    %c0_i32_1 = arith.constant 0 : i32
    return %c0_i32, %c0_i32_0 : i32, i32
  }
  func.func @transform_5(%arg0: i32) -> (i32, i32) {
    %c0_i32 = arith.constant 0 : i32
    %c0_i32_0 = arith.constant 0 : i32
    %c0_i32_1 = arith.constant 0 : i32
    return %c0_i32, %c0_i32_0 : i32, i32
  }
  func.func @transform_6(%arg0: i32) -> (i32, i32) {
    %c0_i32 = arith.constant 0 : i32
    %c0_i32_0 = arith.constant 0 : i32
    %c0_i32_1 = arith.constant 0 : i32
    return %c0_i32, %c0_i32_0 : i32, i32
  }
  func.func @transform_7(%arg0: i32) -> (i32, i32) {
    %c0_i32 = arith.constant 0 : i32
    %c0_i32_0 = arith.constant 0 : i32
    return %arg0, %c0_i32 : i32, i32
  }
}

</mosaic_0001>

<llo_original>
// kernel: tpu_custom_call.1
$region0: #{tpu_custom_call.1}
  #allocation0 [shape = 'u32[]', space=smem, size = 0x4, offset = 0x4, fixed_abs, tag = 'smem constant byte address 0x4 - core index']
  #allocation1 [shape = 'u32[144,128]{1,0:T(1,128)}', space=vmem, size = 0x12000, scoped, tag = 'internal scratch']
  %s0 = inlined_call_operand.hbm [shape: f32[16,40], index: 0, kind: input, shape index: {}]
  %s1 = inlined_call_operand.hbm [shape: bf16[40,128], index: 1, kind: input, shape index: {}]
  %s2 = inlined_call_operand.vmem [shape: f32[1,128], index: 2, kind: input, shape index: {}]
  %s3 = inlined_call_operand.hbm [shape: bf16[6,128,128], index: 3, kind: input, shape index: {}]
  %s4 = inlined_call_operand.vmem [shape: f32[6,128], index: 4, kind: input, shape index: {}]
  %s5 = inlined_call_operand.hbm [shape: bf16[128,384], index: 5, kind: input, shape index: {}]
  %s6 = inlined_call_operand.vmem [shape: f32[1,384], index: 6, kind: input, shape index: {}]
  %s7 = inlined_call_operand.hbm [shape: f32[16,384], index: 7, kind: output, shape index: {}]
  %s8 = sld [smem:[#allocation0]]
  $region54: #{tpu_custom_call.1} parent=0
    _
  %s10 = ssub.s32 1, %s8
  %s11 = scalar_select 0, %s10, %s8
  $region1: #{tpu_custom_call.1} parent=0
    #allocation2 [shape = 'u8[8192]{0}', space=vmem, size = 0x2000, scoped, tag = 'input window, operand 0, single buffered']
    #allocation3 [shape = 's32[1]{0}', space=sflag, size = 0x4, scoped, tag = 'scoped memory for tpu_custom_call.1']
    #allocation4 [shape = 's32[1]{0}', space=sflag, size = 0x4, scoped, tag = 'scoped memory for tpu_custom_call.1']
    #allocation5 [shape = 'u8[10240]{0}', space=vmem, size = 0x2800, scoped, tag = 'input window, operand 1, single buffered']
    #allocation6 [shape = 's32[1]{0}', space=sflag, size = 0x4, scoped, tag = 'scoped memory for tpu_custom_call.1']
    #allocation7 [shape = 'u8[196608]{0}', space=vmem, size = 0x30000, scoped, tag = 'input window, operand 3, single buffered']
    #allocation8 [shape = 'u8[98304]{0}', space=vmem, size = 0x18000, scoped, tag = 'input window, operand 5, single buffered']
    #allocation9 [shape = 's32[1]{0}', space=sflag, size = 0x4, scoped, tag = 'scoped memory for tpu_custom_call.1']
    #allocation10 [shape = 'u8[24576]{0}', space=vmem, size = 0x6000, scoped, tag = 'output window, operand 0, single buffered']
    %12 = vsyncpa [#allocation3], 0
    %13 = vsyncpa [#allocation6], 0
    %14 = vsyncpa [#allocation9], 0
    %15 = vsyncpa [#allocation4], 0
    // Predicated region
    $region2: #{tpu_custom_call.1} parent=1 // pred_check
      _
    $region3: #{tpu_custom_call.1} parent=1 // pred_check_branch
      %17 = sbr.rel (0) target = $region5
    $region4: #{tpu_custom_call.1} parent=1 // pred_region
      %s19 = ssub.s32 256, 256
      %20 = vsyncadd [#allocation3], %s19
      %s21 = sshll.u32 [#allocation2], 4
      %s22 = int_to_ptr.vmem [resolvable:$true] %s21
      %27 = dma.hbm_to_vmem [thread:$0]  %s0, 256, %s22, [#allocation3], 128, 128, 8
    $region5: #{tpu_custom_call.1} parent=1 // pred_fallthru
      _
    // Predicated region
    $region6: #{tpu_custom_call.1} parent=1 // pred_check
      _
    $region7: #{tpu_custom_call.1} parent=1 // pred_check_branch
      %29 = sbr.rel (0) target = $region9
    $region8: #{tpu_custom_call.1} parent=1 // pred_region
      %s31 = ssub.s32 320, 320
      %32 = vsyncadd [#allocation6], %s31
      %s33 = sshll.u32 [#allocation5], 4
      %s34 = int_to_ptr.vmem [resolvable:$true] %s33
      %39 = dma.hbm_to_vmem [thread:$0]  %s1, 320, %s34, [#allocation6], 64, 64, 4
    $region9: #{tpu_custom_call.1} parent=1 // pred_fallthru
      _
    // Predicated region
    $region10: #{tpu_custom_call.1} parent=1 // pred_check
      _
    $region11: #{tpu_custom_call.1} parent=1 // pred_check_branch
      %41 = sbr.rel (0) target = $region13
    $region12: #{tpu_custom_call.1} parent=1 // pred_region
      _
    $region13: #{tpu_custom_call.1} parent=1 // pred_fallthru
      _
    // Predicated region
    $region14: #{tpu_custom_call.1} parent=1 // pred_check
      _
    $region15: #{tpu_custom_call.1} parent=1 // pred_check_branch
      %43 = sbr.rel (0) target = $region17
    $region16: #{tpu_custom_call.1} parent=1 // pred_region
      %s45 = ssub.s32 6144, 6144
      %46 = vsyncadd [#allocation6], %s45
      %s47 = sshll.u32 [#allocation7], 4
      %s48 = int_to_ptr.vmem [resolvable:$true] %s47
      %53 = dma.hbm_to_vmem [thread:$0]  %s3, 6144, %s48, [#allocation6], 64, 64, 4
    $region17: #{tpu_custom_call.1} parent=1 // pred_fallthru
      _
    // Predicated region
    $region18: #{tpu_custom_call.1} parent=1 // pred_check
      _
    $region19: #{tpu_custom_call.1} parent=1 // pred_check_branch
      %55 = sbr.rel (0) target = $region21
    $region20: #{tpu_custom_call.1} parent=1 // pred_region
      _
    $region21: #{tpu_custom_call.1} parent=1 // pred_fallthru
      _
    // Predicated region
    $region22: #{tpu_custom_call.1} parent=1 // pred_check
      _
    $region23: #{tpu_custom_call.1} parent=1 // pred_check_branch
      %57 = sbr.rel (0) target = $region25
    $region24: #{tpu_custom_call.1} parent=1 // pred_region
      %s59 = ssub.s32 3072, 3072
      %60 = vsyncadd [#allocation9], %s59
      %s61 = sshll.u32 [#allocation8], 4
      %s62 = int_to_ptr.vmem [resolvable:$true] %s61
      %67 = dma.hbm_to_vmem [thread:$0]  %s5, 3072, %s62, [#allocation9], 192, 192, 12
    $region25: #{tpu_custom_call.1} parent=1 // pred_fallthru
      _
    // Predicated region
    $region26: #{tpu_custom_call.1} parent=1 // pred_check
      _
    $region27: #{tpu_custom_call.1} parent=1 // pred_check_branch
      %69 = sbr.rel (0) target = $region29
    $region28: #{tpu_custom_call.1} parent=1 // pred_region
      _
    $region29: #{tpu_custom_call.1} parent=1 // pred_fallthru
      _
    // Predicated region
    $region30: #{tpu_custom_call.1} parent=1 // pred_check
      _
    $region31: #{tpu_custom_call.1} parent=1 // pred_check_branch
      %71 = sbr.rel (0) target = $region33
    $region32: #{tpu_custom_call.1} parent=1 // pred_region
      %72 = dma.done [#allocation3], 256
    $region33: #{tpu_custom_call.1} parent=1 // pred_fallthru
      _
    // Predicated region
    $region34: #{tpu_custom_call.1} parent=1 // pred_check
      _
    $region35: #{tpu_custom_call.1} parent=1 // pred_check_branch
      %74 = sbr.rel (0) target = $region37
    $region36: #{tpu_custom_call.1} parent=1 // pred_region
      %75 = dma.done [#allocation6], 320
    $region37: #{tpu_custom_call.1} parent=1 // pred_fallthru
      _
    // Predicated region
    $region38: #{tpu_custom_call.1} parent=1 // pred_check
      _
    $region39: #{tpu_custom_call.1} parent=1 // pred_check_branch
      %77 = sbr.rel (0) target = $region41
    $region40: #{tpu_custom_call.1} parent=1 // pred_region
      %78 = dma.done [#allocation6], 6144
    $region41: #{tpu_custom_call.1} parent=1 // pred_fallthru
      _
    // Predicated region
    $region42: #{tpu_custom_call.1} parent=1 // pred_check
      _
    $region43: #{tpu_custom_call.1} parent=1 // pred_check_branch
      %80 = sbr.rel (0) target = $region45
    $region44: #{tpu_custom_call.1} parent=1 // pred_region
      %81 = dma.done [#allocation9], 3072
    $region45: #{tpu_custom_call.1} parent=1 // pred_fallthru
      _
    %v83 = vld [vmem:[#allocation2] sm:$0xff]
    %v84 = vld [vmem:[#allocation2 + $0x8] sm:$0xff]
    %v85 = vpack.c.bf16 %v84, %v83
    %v86 = vld [vmem:[#allocation5] sm:$0xf]
    %v87 = vld [vmem:[#allocation5 + $0x4] sm:$0xf]
    %v88 = vld [vmem:[#allocation5 + $0x8] sm:$0xf]
    %v89 = vld [vmem:[#allocation5 + $0xc] sm:$0xf]
    %v90 = vld [vmem:[#allocation5 + $0x10] sm:$0xf]
    %v91 = vld [vmem:[%s2] sm:$0x1]
    %v93 = vlaneseq
    %v94 = vshrl.u32 %v93, 7
    %v95 = vsub.s32 0, %v94
    %v96 = vrot.slane %v91, %v95
    %v103 = vunpack.c.l.b16 %v86
    %v104 = vunpack.c.l.b16 %v87
    %v105 = vunpack.c.l.b16 %v88
    %v106 = vunpack.c.l.b16 %v89
    %v107 = vunpack.c.l.b16 %v90
    %v108 = vpack.c.b16 %v104, %v103
    %v109 = vpack.c.b16 %v106, %v105
    %v110 = vpack.c.b16 %v107, %v107
    %vm113 = vcmask 326656
    %v115 = vsel %vm113, %v85, 0
    %vm117 = vcmask 1043456
    %v119 = vsel %vm117, %v110, 0
    %121 = vmatprep.subr.bf16.mxu0 0
    %122 = vmatpush1.bf16.msra.mxu0 %v108
    %123 = vmatprep.subr.bf16.mxu0 0
    %124 = vmatpush1.bf16.msra.mxu0 %v109
    %125 = vmatprep.subr.bf16.mxu0 0
    %126 = vmatpush1.bf16.msra.mxu0 %v119
    %127 = vmatprep.subr.bf16.mxu0 0
    %128 = vmatpush1.bf16.msra.mxu0 0
    %129 = vmatprep.subr.bf16.mxu0 0
    %130 = vmatpush1.bf16.msra.mxu0 0
    %131 = vmatprep.subr.bf16.mxu0 0
    %132 = vmatpush1.bf16.msra.mxu0 0
    %133 = vmatprep.subr.bf16.mxu0 0
    %134 = vmatpush1.bf16.msra.mxu0 0
    %135 = vmatprep.subr.bf16.mxu0 0
    %136 = vmatpush1.bf16.msra.mxu0 0
    %137 = vmatprep.subr.bf16.mxu0 0
    %138 = vmatpush1.bf16.msra.mxu0 0
    %139 = vmatprep.subr.bf16.mxu0 0
    %140 = vmatpush1.bf16.msra.mxu0 0
    %141 = vmatprep.subr.bf16.mxu0 0
    %142 = vmatpush1.bf16.msra.mxu0 0
    %143 = vmatprep.subr.bf16.mxu0 0
    %144 = vmatpush1.bf16.msra.mxu0 0
    %145 = vmatprep.subr.bf16.mxu0 0
    %146 = vmatpush1.bf16.msra.mxu0 0
    %147 = vmatprep.subr.bf16.mxu0 0
    %148 = vmatpush1.bf16.msra.mxu0 0
    %149 = vmatprep.subr.bf16.mxu0 0
    %150 = vmatpush1.bf16.msra.mxu0 0
    %151 = vmatprep.subr.bf16.mxu0 0
    %152 = vmatpush1.bf16.msra.mxu0 0
    %153 = vmatprep.mubr.bf16.mxu0 0
    %154 = vmatmul.mubr.bf16.gmra.mrb[0].mxu0 %v115
    %v155 = vpop.f32.mrb[0].mxu0
    %v156 = vadd.f32 %v96, %v155
    %v157 = vpop.f32.mrb[0].mxu0
    %v158 = vpop.f32.mrb[0].mxu0
    %v159 = vadd.f32 %v96, %v158
    %v160 = vpop.f32.mrb[0].mxu0
    %161 = vdwg.mxu0
    %v162 = vmax.f32 %v156, 0.0
    %v163 = vmax.f32 %v159, 0.0
    %v164 = vpack.c.bf16 %v163, %v162
    %v165 = vld [vmem:[#allocation7] sm:$0xf]
    %v166 = vld [vmem:[#allocation7 + $0x4] sm:$0xf]
    %v167 = vld [vmem:[#allocation7 + $0x8] sm:$0xf]
    %v168 = vld [vmem:[#allocation7 + $0xc] sm:$0xf]
    %v169 = vld [vmem:[#allocation7 + $0x10] sm:$0xf]
    %v170 = vld [vmem:[#allocation7 + $0x14] sm:$0xf]
    %v171 = vld [vmem:[#allocation7 + $0x18] sm:$0xf]
    %v172 = vld [vmem:[#allocation7 + $0x1c] sm:$0xf]
    %v173 = vld [vmem:[#allocation7 + $0x20] sm:$0xf]
    %v174 = vld [vmem:[#allocation7 + $0x24] sm:$0xf]
    %v175 = vld [vmem:[#allocation7 + $0x28] sm:$0xf]
    %v176 = vld [vmem:[#allocation7 + $0x2c] sm:$0xf]
    %v177 = vld [vmem:[#allocation7 + $0x30] sm:$0xf]
    %v178 = vld [vmem:[#allocation7 + $0x34] sm:$0xf]
    %v179 = vld [vmem:[#allocation7 + $0x38] sm:$0xf]
    %v180 = vld [vmem:[#allocation7 + $0x3c] sm:$0xf]
    %v181 = vld [vmem:[%s4] sm:$0x1]
    %v182 = vlaneseq
    %v183 = vshrl.u32 %v182, 7
    %v184 = vsub.s32 0, %v183
    %v185 = vrot.slane %v181, %v184
    %v202 = vunpack.c.l.b16 %v165
    %v203 = vunpack.c.l.b16 %v166
    %v204 = vunpack.c.l.b16 %v167
    %v205 = vunpack.c.l.b16 %v168
    %v206 = vunpack.c.l.b16 %v169
    %v207 = vunpack.c.l.b16 %v170
    %v208 = vunpack.c.l.b16 %v171
    %v209 = vunpack.c.l.b16 %v172
    %v210 = vunpack.c.l.b16 %v173
    %v211 = vunpack.c.l.b16 %v174
    %v212 = vunpack.c.l.b16 %v175
    %v213 = vunpack.c.l.b16 %v176
    %v214 = vunpack.c.l.b16 %v177
    %v215 = vunpack.c.l.b16 %v178
    %v216 = vunpack.c.l.b16 %v179
    %v217 = vunpack.c.l.b16 %v180
    %v218 = vpack.c.b16 %v203, %v202
    %v219 = vpack.c.b16 %v205, %v204
    %v220 = vpack.c.b16 %v207, %v206
    %v221 = vpack.c.b16 %v209, %v208
    %v222 = vpack.c.b16 %v211, %v210
    %v223 = vpack.c.b16 %v213, %v212
    %v224 = vpack.c.b16 %v215, %v214
    %v225 = vpack.c.b16 %v217, %v216
    %234 = vmatprep.subr.bf16.mxu0 0
    %235 = vmatpush1.bf16.msra.mxu0 %v218
    %236 = vmatprep.subr.bf16.mxu0 0
    %237 = vmatpush1.bf16.msra.mxu0 %v219
    %238 = vmatprep.subr.bf16.mxu0 0
    %239 = vmatpush1.bf16.msra.mxu0 %v220
    %240 = vmatprep.subr.bf16.mxu0 0
    %241 = vmatpush1.bf16.msra.mxu0 %v221
    %242 = vmatprep.subr.bf16.mxu0 0
    %243 = vmatpush1.bf16.msra.mxu0 %v222
    %244 = vmatprep.subr.bf16.mxu0 0
    %245 = vmatpush1.bf16.msra.mxu0 %v223
    %246 = vmatprep.subr.bf16.mxu0 0
    %247 = vmatpush1.bf16.msra.mxu0 %v224
    %248 = vmatprep.subr.bf16.mxu0 0
    %249 = vmatpush1.bf16.msra.mxu0 %v225
    %250 = vmatprep.subr.bf16.mxu0 0
    %251 = vmatpush1.bf16.msra.mxu0 0
    %252 = vmatprep.subr.bf16.mxu0 0
    %253 = vmatpush1.bf16.msra.mxu0 0
    %254 = vmatprep.subr.bf16.mxu0 0
    %255 = vmatpush1.bf16.msra.mxu0 0
    %256 = vmatprep.subr.bf16.mxu0 0
    %257 = vmatpush1.bf16.msra.mxu0 0
    %258 = vmatprep.subr.bf16.mxu0 0
    %259 = vmatpush1.bf16.msra.mxu0 0
    %260 = vmatprep.subr.bf16.mxu0 0
    %261 = vmatpush1.bf16.msra.mxu0 0
    %262 = vmatprep.subr.bf16.mxu0 0
    %263 = vmatpush1.bf16.msra.mxu0 0
    %264 = vmatprep.subr.bf16.mxu0 0
    %265 = vmatpush1.bf16.msra.mxu0 0
    %266 = vmatprep.mubr.bf16.mxu0 0
    %267 = vmatmul.mubr.bf16.gmra.mrb[0].mxu0 %v164
    %v268 = vpop.f32.mrb[0].mxu0
    %v269 = vadd.f32 %v185, %v268
    %v270 = vpop.f32.mrb[0].mxu0
    %v271 = vpop.f32.mrb[0].mxu0
    %v272 = vadd.f32 %v185, %v271
    %v273 = vpop.f32.mrb[0].mxu0
    %274 = vdwg.mxu0
    %v275 = vmax.f32 %v269, 0.0
    %v276 = vmax.f32 %v272, 0.0
    %v277 = vpack.c.bf16 %v276, %v275
    %s278 = scalar_lea.vmem [#allocation7], 64
    %v279 = vld [vmem:[%s278] sm:$0xf]
    %v280 = vld [vmem:[%s278 + $0x4] sm:$0xf]
    %v281 = vld [vmem:[%s278 + $0x8] sm:$0xf]
    %v282 = vld [vmem:[%s278 + $0xc] sm:$0xf]
    %v283 = vld [vmem:[%s278 + $0x10] sm:$0xf]
    %v284 = vld [vmem:[%s278 + $0x14] sm:$0xf]
    %v285 = vld [vmem:[%s278 + $0x18] sm:$0xf]
    %v286 = vld [vmem:[%s278 + $0x1c] sm:$0xf]
    %v287 = vld [vmem:[%s278 + $0x20] sm:$0xf]
    %v288 = vld [vmem:[%s278 + $0x24] sm:$0xf]
    %v289 = vld [vmem:[%s278 + $0x28] sm:$0xf]
    %v290 = vld [vmem:[%s278 + $0x2c] sm:$0xf]
    %v291 = vld [vmem:[%s278 + $0x30] sm:$0xf]
    %v292 = vld [vmem:[%s278 + $0x34] sm:$0xf]
    %v293 = vld [vmem:[%s278 + $0x38] sm:$0xf]
    %v294 = vld [vmem:[%s278 + $0x3c] sm:$0xf]
    %v295 = vld [vmem:[%s4 + $0x1] sm:$0x1]
    %v296 = vlaneseq
    %v297 = vshrl.u32 %v296, 7
    %v298 = vsub.s32 0, %v297
    %v299 = vrot.slane %v295, %v298
    %v316 = vunpack.c.l.b16 %v279
    %v317 = vunpack.c.l.b16 %v280
    %v318 = vunpack.c.l.b16 %v281
    %v319 = vunpack.c.l.b16 %v282
    %v320 = vunpack.c.l.b16 %v283
    %v321 = vunpack.c.l.b16 %v284
    %v322 = vunpack.c.l.b16 %v285
    %v323 = vunpack.c.l.b16 %v286
    %v324 = vunpack.c.l.b16 %v287
    %v325 = vunpack.c.l.b16 %v288
    %v326 = vunpack.c.l.b16 %v289
    %v327 = vunpack.c.l.b16 %v290
    %v328 = vunpack.c.l.b16 %v291
    %v329 = vunpack.c.l.b16 %v292
    %v330 = vunpack.c.l.b16 %v293
    %v331 = vunpack.c.l.b16 %v294
    %v332 = vpack.c.b16 %v317, %v316
    %v333 = vpack.c.b16 %v319, %v318
    %v334 = vpack.c.b16 %v321, %v320
    %v335 = vpack.c.b16 %v323, %v322
    %v336 = vpack.c.b16 %v325, %v324
    %v337 = vpack.c.b16 %v327, %v326
    %v338 = vpack.c.b16 %v329, %v328
    %v339 = vpack.c.b16 %v331, %v330
    %348 = vmatprep.subr.bf16.mxu0 0
    %349 = vmatpush1.bf16.msra.mxu0 %v332
    %350 = vmatprep.subr.bf16.mxu0 0
    %351 = vmatpush1.bf16.msra.mxu0 %v333
    %352 = vmatprep.subr.bf16.mxu0 0
    %353 = vmatpush1.bf16.msra.mxu0 %v334
    %354 = vmatprep.subr.bf16.mxu0 0
    %355 = vmatpush1.bf16.msra.mxu0 %v335
    %356 = vmatprep.subr.bf16.mxu0 0
    %357 = vmatpush1.bf16.msra.mxu0 %v336
    %358 = vmatprep.subr.bf16.mxu0 0
    %359 = vmatpush1.bf16.msra.mxu0 %v337
    %360 = vmatprep.subr.bf16.mxu0 0
    %361 = vmatpush1.bf16.msra.mxu0 %v338
    %362 = vmatprep.subr.bf16.mxu0 0
    %363 = vmatpush1.bf16.msra.mxu0 %v339
    %364 = vmatprep.subr.bf16.mxu0 0
    %365 = vmatpush1.bf16.msra.mxu0 0
    %366 = vmatprep.subr.bf16.mxu0 0
    %367 = vmatpush1.bf16.msra.mxu0 0
    %368 = vmatprep.subr.bf16.mxu0 0
    %369 = vmatpush1.bf16.msra.mxu0 0
    %370 = vmatprep.subr.bf16.mxu0 0
    %371 = vmatpush1.bf16.msra.mxu0 0
    %372 = vmatprep.subr.bf16.mxu0 0
    %373 = vmatpush1.bf16.msra.mxu0 0
    %374 = vmatprep.subr.bf16.mxu0 0
    %375 = vmatpush1.bf16.msra.mxu0 0
    %376 = vmatprep.subr.bf16.mxu0 0
    %377 = vmatpush1.bf16.msra.mxu0 0
    %378 = vmatprep.subr.bf16.mxu0 0
    %379 = vmatpush1.bf16.msra.mxu0 0
    %380 = vmatprep.mubr.bf16.mxu0 0
    %381 = vmatmul.mubr.bf16.gmra.mrb[0].mxu0 %v277
    %v382 = vpop.f32.mrb[0].mxu0
    %v383 = vadd.f32 %v299, %v382
    %v384 = vpop.f32.mrb[0].mxu0
    %v385 = vpop.f32.mrb[0].mxu0
    %v386 = vadd.f32 %v299, %v385
    %v387 = vpop.f32.mrb[0].mxu0
    %388 = vdwg.mxu0
    %v389 = vmax.f32 %v383, 0.0
    %v390 = vmax.f32 %v386, 0.0
    %v391 = vpack.c.bf16 %v390, %v389
    %s392 = scalar_lea.vmem [#allocation7], 128
    %v393 = vld [vmem:[%s392] sm:$0xf]
    %v394 = vld [vmem:[%s392 + $0x4] sm:$0xf]
    %v395 = vld [vmem:[%s392 + $0x8] sm:$0xf]
    %v396 = vld [vmem:[%s392 + $0xc] sm:$0xf]
    %v397 = vld [vmem:[%s392 + $0x10] sm:$0xf]
    %v398 = vld [vmem:[%s392 + $0x14] sm:$0xf]
    %v399 = vld [vmem:[%s392 + $0x18] sm:$0xf]
    %v400 = vld [vmem:[%s392 + $0x1c] sm:$0xf]
    %v401 = vld [vmem:[%s392 + $0x20] sm:$0xf]
    %v402 = vld [vmem:[%s392 + $0x24] sm:$0xf]
    %v403 = vld [vmem:[%s392 + $0x28] sm:$0xf]
    %v404 = vld [vmem:[%s392 + $0x2c] sm:$0xf]
    %v405 = vld [vmem:[%s392 + $0x30] sm:$0xf]
    %v406 = vld [vmem:[%s392 + $0x34] sm:$0xf]
    %v407 = vld [vmem:[%s392 + $0x38] sm:$0xf]
    %v408 = vld [vmem:[%s392 + $0x3c] sm:$0xf]
    %v409 = vld [vmem:[%s4 + $0x2] sm:$0x1]
    %v410 = vlaneseq
    %v411 = vshrl.u32 %v410, 7
    %v412 = vsub.s32 0, %v411
    %v413 = vrot.slane %v409, %v412
    %v430 = vunpack.c.l.b16 %v393
    %v431 = vunpack.c.l.b16 %v394
    %v432 = vunpack.c.l.b16 %v395
    %v433 = vunpack.c.l.b16 %v396
    %v434 = vunpack.c.l.b16 %v397
    %v435 = vunpack.c.l.b16 %v398
    %v436 = vunpack.c.l.b16 %v399
    %v437 = vunpack.c.l.b16 %v400
    %v438 = vunpack.c.l.b16 %v401
    %v439 = vunpack.c.l.b16 %v402
    %v440 = vunpack.c.l.b16 %v403
    %v441 = vunpack.c.l.b16 %v404
    %v442 = vunpack.c.l.b16 %v405
    %v443 = vunpack.c.l.b16 %v406
    %v444 = vunpack.c.l.b16 %v407
    %v445 = vunpack.c.l.b16 %v408
    %v446 = vpack.c.b16 %v431, %v430
    %v447 = vpack.c.b16 %v433, %v432
    %v448 = vpack.c.b16 %v435, %v434
    %v449 = vpack.c.b16 %v437, %v436
    %v450 = vpack.c.b16 %v439, %v438
    %v451 = vpack.c.b16 %v441, %v440
    %v452 = vpack.c.b16 %v443, %v442
    %v453 = vpack.c.b16 %v445, %v444
    %462 = vmatprep.subr.bf16.mxu0 0
    %463 = vmatpush1.bf16.msra.mxu0 %v446
    %464 = vmatprep.subr.bf16.mxu0 0
    %465 = vmatpush1.bf16.msra.mxu0 %v447
    %466 = vmatprep.subr.bf16.mxu0 0
    %467 = vmatpush1.bf16.msra.mxu0 %v448
    %468 = vmatprep.subr.bf16.mxu0 0
    %469 = vmatpush1.bf16.msra.mxu0 %v449
    %470 = vmatprep.subr.bf16.mxu0 0
    %471 = vmatpush1.bf16.msra.mxu0 %v450
    %472 = vmatprep.subr.bf16.mxu0 0
    %473 = vmatpush1.bf16.msra.mxu0 %v451
    %474 = vmatprep.subr.bf16.mxu0 0
    %475 = vmatpush1.bf16.msra.mxu0 %v452
    %476 = vmatprep.subr.bf16.mxu0 0
    %477 = vmatpush1.bf16.msra.mxu0 %v453
    %478 = vmatprep.subr.bf16.mxu0 0
    %479 = vmatpush1.bf16.msra.mxu0 0
    %480 = vmatprep.subr.bf16.mxu0 0
    %481 = vmatpush1.bf16.msra.mxu0 0
    %482 = vmatprep.subr.bf16.mxu0 0
    %483 = vmatpush1.bf16.msra.mxu0 0
    %484 = vmatprep.subr.bf16.mxu0 0
    %485 = vmatpush1.bf16.msra.mxu0 0
    %486 = vmatprep.subr.bf16.mxu0 0
    %487 = vmatpush1.bf16.msra.mxu0 0
    %488 = vmatprep.subr.bf16.mxu0 0
    %489 = vmatpush1.bf16.msra.mxu0 0
    %490 = vmatprep.subr.bf16.mxu0 0
    %491 = vmatpush1.bf16.msra.mxu0 0
    %492 = vmatprep.subr.bf16.mxu0 0
    %493 = vmatpush1.bf16.msra.mxu0 0
    %494 = vmatprep.mubr.bf16.mxu0 0
    %495 = vmatmul.mubr.bf16.gmra.mrb[0].mxu0 %v391
    %v496 = vpop.f32.mrb[0].mxu0
    %v497 = vadd.f32 %v413, %v496
    %v498 = vpop.f32.mrb[0].mxu0
    %v499 = vpop.f32.mrb[0].mxu0
    %v500 = vadd.f32 %v413, %v499
    %v501 = vpop.f32.mrb[0].mxu0
    %502 = vdwg.mxu0
    %v503 = vmax.f32 %v497, 0.0
    %v504 = vmax.f32 %v500, 0.0
    %v505 = vpack.c.bf16 %v504, %v503
    %s506 = scalar_lea.vmem [#allocation7], 192
    %v507 = vld [vmem:[%s506] sm:$0xf]
    %v508 = vld [vmem:[%s506 + $0x4] sm:$0xf]
    %v509 = vld [vmem:[%s506 + $0x8] sm:$0xf]
    %v510 = vld [vmem:[%s506 + $0xc] sm:$0xf]
    %v511 = vld [vmem:[%s506 + $0x10] sm:$0xf]
    %v512 = vld [vmem:[%s506 + $0x14] sm:$0xf]
    %v513 = vld [vmem:[%s506 + $0x18] sm:$0xf]
    %v514 = vld [vmem:[%s506 + $0x1c] sm:$0xf]
    %v515 = vld [vmem:[%s506 + $0x20] sm:$0xf]
    %v516 = vld [vmem:[%s506 + $0x24] sm:$0xf]
    %v517 = vld [vmem:[%s506 + $0x28] sm:$0xf]
    %v518 = vld [vmem:[%s506 + $0x2c] sm:$0xf]
    %v519 = vld [vmem:[%s506 + $0x30] sm:$0xf]
    %v520 = vld [vmem:[%s506 + $0x34] sm:$0xf]
    %v521 = vld [vmem:[%s506 + $0x38] sm:$0xf]
    %v522 = vld [vmem:[%s506 + $0x3c] sm:$0xf]
    %v523 = vld [vmem:[%s4 + $0x3] sm:$0x1]
    %v524 = vlaneseq
    %v525 = vshrl.u32 %v524, 7
    %v526 = vsub.s32 0, %v525
    %v527 = vrot.slane %v523, %v526
    %v544 = vunpack.c.l.b16 %v507
    %v545 = vunpack.c.l.b16 %v508
    %v546 = vunpack.c.l.b16 %v509
    %v547 = vunpack.c.l.b16 %v510
    %v548 = vunpack.c.l.b16 %v511
    %v549 = vunpack.c.l.b16 %v512
    %v550 = vunpack.c.l.b16 %v513
    %v551 = vunpack.c.l.b16 %v514
    %v552 = vunpack.c.l.b16 %v515
    %v553 = vunpack.c.l.b16 %v516
    %v554 = vunpack.c.l.b16 %v517
    %v555 = vunpack.c.l.b16 %v518
    %v556 = vunpack.c.l.b16 %v519
    %v557 = vunpack.c.l.b16 %v520
    %v558 = vunpack.c.l.b16 %v521
    %v559 = vunpack.c.l.b16 %v522
    %v560 = vpack.c.b16 %v545, %v544
    %v561 = vpack.c.b16 %v547, %v546
    %v562 = vpack.c.b16 %v549, %v548
    %v563 = vpack.c.b16 %v551, %v550
    %v564 = vpack.c.b16 %v553, %v552
    %v565 = vpack.c.b16 %v555, %v554
    %v566 = vpack.c.b16 %v557, %v556
    %v567 = vpack.c.b16 %v559, %v558
    %576 = vmatprep.subr.bf16.mxu0 0
    %577 = vmatpush1.bf16.msra.mxu0 %v560
    %578 = vmatprep.subr.bf16.mxu0 0
    %579 = vmatpush1.bf16.msra.mxu0 %v561
    %580 = vmatprep.subr.bf16.mxu0 0
    %581 = vmatpush1.bf16.msra.mxu0 %v562
    %582 = vmatprep.subr.bf16.mxu0 0
    %583 = vmatpush1.bf16.msra.mxu0 %v563
    %584 = vmatprep.subr.bf16.mxu0 0
    %585 = vmatpush1.bf16.msra.mxu0 %v564
    %586 = vmatprep.subr.bf16.mxu0 0
    %587 = vmatpush1.bf16.msra.mxu0 %v565
    %588 = vmatprep.subr.bf16.mxu0 0
    %589 = vmatpush1.bf16.msra.mxu0 %v566
    %590 = vmatprep.subr.bf16.mxu0 0
    %591 = vmatpush1.bf16.msra.mxu0 %v567
    %592 = vmatprep.subr.bf16.mxu0 0
    %593 = vmatpush1.bf16.msra.mxu0 0
    %594 = vmatprep.subr.bf16.mxu0 0
    %595 = vmatpush1.bf16.msra.mxu0 0
    %596 = vmatprep.subr.bf16.mxu0 0
    %597 = vmatpush1.bf16.msra.mxu0 0
    %598 = vmatprep.subr.bf16.mxu0 0
    %599 = vmatpush1.bf16.msra.mxu0 0
    %600 = vmatprep.subr.bf16.mxu0 0
    %601 = vmatpush1.bf16.msra.mxu0 0
    %602 = vmatprep.subr.bf16.mxu0 0
    %603 = vmatpush1.bf16.msra.mxu0 0
    %604 = vmatprep.subr.bf16.mxu0 0
    %605 = vmatpush1.bf16.msra.mxu0 0
    %606 = vmatprep.subr.bf16.mxu0 0
    %607 = vmatpush1.bf16.msra.mxu0 0
    %608 = vmatprep.mubr.bf16.mxu0 0
    %609 = vmatmul.mubr.bf16.gmra.mrb[0].mxu0 %v505
    %v610 = vpop.f32.mrb[0].mxu0
    %v611 = vadd.f32 %v527, %v610
    %v612 = vpop.f32.mrb[0].mxu0
    %v613 = vpop.f32.mrb[0].mxu0
    %v614 = vadd.f32 %v527, %v613
    %v615 = vpop.f32.mrb[0].mxu0
    %616 = vdwg.mxu0
    %v617 = vmax.f32 %v611, 0.0
    %v618 = vmax.f32 %v614, 0.0
    %v619 = vpack.c.bf16 %v618, %v617
    %s620 = scalar_lea.vmem [#allocation7], 256
    %v621 = vld [vmem:[%s620] sm:$0xf]
    %v622 = vld [vmem:[%s620 + $0x4] sm:$0xf]
    %v623 = vld [vmem:[%s620 + $0x8] sm:$0xf]
    %v624 = vld [vmem:[%s620 + $0xc] sm:$0xf]
    %v625 = vld [vmem:[%s620 + $0x10] sm:$0xf]
    %v626 = vld [vmem:[%s620 + $0x14] sm:$0xf]
    %v627 = vld [vmem:[%s620 + $0x18] sm:$0xf]
    %v628 = vld [vmem:[%s620 + $0x1c] sm:$0xf]
    %v629 = vld [vmem:[%s620 + $0x20] sm:$0xf]
    %v630 = vld [vmem:[%s620 + $0x24] sm:$0xf]
    %v631 = vld [vmem:[%s620 + $0x28] sm:$0xf]
    %v632 = vld [vmem:[%s620 + $0x2c] sm:$0xf]
    %v633 = vld [vmem:[%s620 + $0x30] sm:$0xf]
    %v634 = vld [vmem:[%s620 + $0x34] sm:$0xf]
    %v635 = vld [vmem:[%s620 + $0x38] sm:$0xf]
    %v636 = vld [vmem:[%s620 + $0x3c] sm:$0xf]
    %v637 = vld [vmem:[%s4 + $0x4] sm:$0x1]
    %v638 = vlaneseq
    %v639 = vshrl.u32 %v638, 7
    %v640 = vsub.s32 0, %v639
    %v641 = vrot.slane %v637, %v640
    %v658 = vunpack.c.l.b16 %v621
    %v659 = vunpack.c.l.b16 %v622
    %v660 = vunpack.c.l.b16 %v623
    %v661 = vunpack.c.l.b16 %v624
    %v662 = vunpack.c.l.b16 %v625
    %v663 = vunpack.c.l.b16 %v626
    %v664 = vunpack.c.l.b16 %v627
    %v665 = vunpack.c.l.b16 %v628
    %v666 = vunpack.c.l.b16 %v629
    %v667 = vunpack.c.l.b16 %v630
    %v668 = vunpack.c.l.b16 %v631
    %v669 = vunpack.c.l.b16 %v632
    %v670 = vunpack.c.l.b16 %v633
    %v671 = vunpack.c.l.b16 %v634
    %v672 = vunpack.c.l.b16 %v635
    %v673 = vunpack.c.l.b16 %v636
    %v674 = vpack.c.b16 %v659, %v658
    %v675 = vpack.c.b16 %v661, %v660
    %v676 = vpack.c.b16 %v663, %v662
    %v677 = vpack.c.b16 %v665, %v664
    %v678 = vpack.c.b16 %v667, %v666
    %v679 = vpack.c.b16 %v669, %v668
    %v680 = vpack.c.b16 %v671, %v670
    %v681 = vpack.c.b16 %v673, %v672
    %690 = vmatprep.subr.bf16.mxu0 0
    %691 = vmatpush1.bf16.msra.mxu0 %v674
    %692 = vmatprep.subr.bf16.mxu0 0
    %693 = vmatpush1.bf16.msra.mxu0 %v675
    %694 = vmatprep.subr.bf16.mxu0 0
    %695 = vmatpush1.bf16.msra.mxu0 %v676
    %696 = vmatprep.subr.bf16.mxu0 0
    %697 = vmatpush1.bf16.msra.mxu0 %v677
    %698 = vmatprep.subr.bf16.mxu0 0
    %699 = vmatpush1.bf16.msra.mxu0 %v678
    %700 = vmatprep.subr.bf16.mxu0 0
    %701 = vmatpush1.bf16.msra.mxu0 %v679
    %702 = vmatprep.subr.bf16.mxu0 0
    %703 = vmatpush1.bf16.msra.mxu0 %v680
    %704 = vmatprep.subr.bf16.mxu0 0
    %705 = vmatpush1.bf16.msra.mxu0 %v681
    %706 = vmatprep.subr.bf16.mxu0 0
    %707 = vmatpush1.bf16.msra.mxu0 0
    %708 = vmatprep.subr.bf16.mxu0 0
    %709 = vmatpush1.bf16.msra.mxu0 0
    %710 = vmatprep.subr.bf16.mxu0 0
    %711 = vmatpush1.bf16.msra.mxu0 0
    %712 = vmatprep.subr.bf16.mxu0 0
    %713 = vmatpush1.bf16.msra.mxu0 0
    %714 = vmatprep.subr.bf16.mxu0 0
    %715 = vmatpush1.bf16.msra.mxu0 0
    %716 = vmatprep.subr.bf16.mxu0 0
    %717 = vmatpush1.bf16.msra.mxu0 0
    %718 = vmatprep.subr.bf16.mxu0 0
    %719 = vmatpush1.bf16.msra.mxu0 0
    %720 = vmatprep.subr.bf16.mxu0 0
    %721 = vmatpush1.bf16.msra.mxu0 0
    %722 = vmatprep.mubr.bf16.mxu0 0
    %723 = vmatmul.mubr.bf16.gmra.mrb[0].mxu0 %v619
    %v724 = vpop.f32.mrb[0].mxu0
    %v725 = vadd.f32 %v641, %v724
    %v726 = vpop.f32.mrb[0].mxu0
    %v727 = vpop.f32.mrb[0].mxu0
    %v728 = vadd.f32 %v641, %v727
    %v729 = vpop.f32.mrb[0].mxu0
    %730 = vdwg.mxu0
    %v731 = vmax.f32 %v725, 0.0
    %v732 = vmax.f32 %v728, 0.0
    %v733 = vpack.c.bf16 %v732, %v731
    %s734 = scalar_lea.vmem [#allocation7], 320
    %v735 = vld [vmem:[%s734] sm:$0xf]
    %v736 = vld [vmem:[%s734 + $0x4] sm:$0xf]
    %v737 = vld [vmem:[%s734 + $0x8] sm:$0xf]
    %v738 = vld [vmem:[%s734 + $0xc] sm:$0xf]
    %v739 = vld [vmem:[%s734 + $0x10] sm:$0xf]
    %v740 = vld [vmem:[%s734 + $0x14] sm:$0xf]
    %v741 = vld [vmem:[%s734 + $0x18] sm:$0xf]
    %v742 = vld [vmem:[%s734 + $0x1c] sm:$0xf]
    %v743 = vld [vmem:[%s734 + $0x20] sm:$0xf]
    %v744 = vld [vmem:[%s734 + $0x24] sm:$0xf]
    %v745 = vld [vmem:[%s734 + $0x28] sm:$0xf]
    %v746 = vld [vmem:[%s734 + $0x2c] sm:$0xf]
    %v747 = vld [vmem:[%s734 + $0x30] sm:$0xf]
    %v748 = vld [vmem:[%s734 + $0x34] sm:$0xf]
    %v749 = vld [vmem:[%s734 + $0x38] sm:$0xf]
    %v750 = vld [vmem:[%s734 + $0x3c] sm:$0xf]
    %v751 = vld [vmem:[%s4 + $0x5] sm:$0x1]
    %v752 = vlaneseq
    %v753 = vshrl.u32 %v752, 7
    %v754 = vsub.s32 0, %v753
    %v755 = vrot.slane %v751, %v754
    %v772 = vunpack.c.l.b16 %v735
    %v773 = vunpack.c.l.b16 %v736
    %v774 = vunpack.c.l.b16 %v737
    %v775 = vunpack.c.l.b16 %v738
    %v776 = vunpack.c.l.b16 %v739
    %v777 = vunpack.c.l.b16 %v740
    %v778 = vunpack.c.l.b16 %v741
    %v779 = vunpack.c.l.b16 %v742
    %v780 = vunpack.c.l.b16 %v743
    %v781 = vunpack.c.l.b16 %v744
    %v782 = vunpack.c.l.b16 %v745
    %v783 = vunpack.c.l.b16 %v746
    %v784 = vunpack.c.l.b16 %v747
    %v785 = vunpack.c.l.b16 %v748
    %v786 = vunpack.c.l.b16 %v749
    %v787 = vunpack.c.l.b16 %v750
    %v788 = vpack.c.b16 %v773, %v772
    %v789 = vpack.c.b16 %v775, %v774
    %v790 = vpack.c.b16 %v777, %v776
    %v791 = vpack.c.b16 %v779, %v778
    %v792 = vpack.c.b16 %v781, %v780
    %v793 = vpack.c.b16 %v783, %v782
    %v794 = vpack.c.b16 %v785, %v784
    %v795 = vpack.c.b16 %v787, %v786
    %804 = vmatprep.subr.bf16.mxu0 0
    %805 = vmatpush1.bf16.msra.mxu0 %v788
    %806 = vmatprep.subr.bf16.mxu0 0
    %807 = vmatpush1.bf16.msra.mxu0 %v789
    %808 = vmatprep.subr.bf16.mxu0 0
    %809 = vmatpush1.bf16.msra.mxu0 %v790
    %810 = vmatprep.subr.bf16.mxu0 0
    %811 = vmatpush1.bf16.msra.mxu0 %v791
    %812 = vmatprep.subr.bf16.mxu0 0
    %813 = vmatpush1.bf16.msra.mxu0 %v792
    %814 = vmatprep.subr.bf16.mxu0 0
    %815 = vmatpush1.bf16.msra.mxu0 %v793
    %816 = vmatprep.subr.bf16.mxu0 0
    %817 = vmatpush1.bf16.msra.mxu0 %v794
    %818 = vmatprep.subr.bf16.mxu0 0
    %819 = vmatpush1.bf16.msra.mxu0 %v795
    %820 = vmatprep.subr.bf16.mxu0 0
    %821 = vmatpush1.bf16.msra.mxu0 0
    %822 = vmatprep.subr.bf16.mxu0 0
    %823 = vmatpush1.bf16.msra.mxu0 0
    %824 = vmatprep.subr.bf16.mxu0 0
    %825 = vmatpush1.bf16.msra.mxu0 0
    %826 = vmatprep.subr.bf16.mxu0 0
    %827 = vmatpush1.bf16.msra.mxu0 0
    %828 = vmatprep.subr.bf16.mxu0 0
    %829 = vmatpush1.bf16.msra.mxu0 0
    %830 = vmatprep.subr.bf16.mxu0 0
    %831 = vmatpush1.bf16.msra.mxu0 0
    %832 = vmatprep.subr.bf16.mxu0 0
    %833 = vmatpush1.bf16.msra.mxu0 0
    %834 = vmatprep.subr.bf16.mxu0 0
    %835 = vmatpush1.bf16.msra.mxu0 0
    %836 = vmatprep.mubr.bf16.mxu0 0
    %837 = vmatmul.mubr.bf16.gmra.mrb[0].mxu0 %v733
    %v838 = vpop.f32.mrb[0].mxu0
    %v839 = vadd.f32 %v755, %v838
    %v840 = vpop.f32.mrb[0].mxu0
    %v841 = vpop.f32.mrb[0].mxu0
    %v842 = vadd.f32 %v755, %v841
    %v843 = vpop.f32.mrb[0].mxu0
    %844 = vdwg.mxu0
    %v845 = vmax.f32 %v839, 0.0
    %v846 = vmax.f32 %v842, 0.0
    %v847 = vpack.c.bf16 %v846, %v845
    %v848 = vld [vmem:[#allocation8] sm:$0xff]
    %v849 = vld [vmem:[#allocation8 + $0x8] sm:$0xf]
    %v850 = vld [vmem:[#allocation8 + $0xc] sm:$0xff]
    %v851 = vld [vmem:[#allocation8 + $0x14] sm:$0xf]
    %v852 = vld [vmem:[#allocation8 + $0x18] sm:$0xff]
    %v853 = vld [vmem:[#allocation8 + $0x20] sm:$0xf]
    %v854 = vld [vmem:[#allocation8 + $0x24] sm:$0xff]
    %v855 = vld [vmem:[#allocation8 + $0x2c] sm:$0xf]
    %v856 = vld [vmem:[#allocation8 + $0x30] sm:$0xff]
    %v857 = vld [vmem:[#allocation8 + $0x38] sm:$0xf]
    %v858 = vld [vmem:[#allocation8 + $0x3c] sm:$0xff]
    %v859 = vld [vmem:[#allocation8 + $0x44] sm:$0xf]
    %v860 = vld [vmem:[#allocation8 + $0x48] sm:$0xff]
    %v861 = vld [vmem:[#allocation8 + $0x50] sm:$0xf]
    %v862 = vld [vmem:[#allocation8 + $0x54] sm:$0xff]
    %v863 = vld [vmem:[#allocation8 + $0x5c] sm:$0xf]
    %v864 = vld [vmem:[#allocation8 + $0x60] sm:$0xff]
    %v865 = vld [vmem:[#allocation8 + $0x68] sm:$0xf]
    %v866 = vld [vmem:[#allocation8 + $0x6c] sm:$0xff]
    %v867 = vld [vmem:[#allocation8 + $0x74] sm:$0xf]
    %v868 = vld [vmem:[#allocation8 + $0x78] sm:$0xff]
    %v869 = vld [vmem:[#allocation8 + $0x80] sm:$0xf]
    %v870 = vld [vmem:[#allocation8 + $0x84] sm:$0xff]
    %v871 = vld [vmem:[#allocation8 + $0x8c] sm:$0xf]
    %v872 = vld [vmem:[#allocation8 + $0x90] sm:$0xff]
    %v873 = vld [vmem:[#allocation8 + $0x98] sm:$0xf]
    %v874 = vld [vmem:[#allocation8 + $0x9c] sm:$0xff]
    %v875 = vld [vmem:[#allocation8 + $0xa4] sm:$0xf]
    %v876 = vld [vmem:[#allocation8 + $0xa8] sm:$0xff]
    %v877 = vld [vmem:[#allocation8 + $0xb0] sm:$0xf]
    %v878 = vld [vmem:[#allocation8 + $0xb4] sm:$0xff]
    %v879 = vld [vmem:[#allocation8 + $0xbc] sm:$0xf]
    %v880 = vld [vmem:[%s6] sm:$0x7]
    %v882 = vlaneseq
    %v883 = vshrl.u32 %v882, 7
    %v884 = vsub.s32 0, %v883
    %v885 = vrot.slane %v880, %v884
    %v886 = vlaneseq
    %v887 = vshrl.u32 %v886, 7
    %v888 = vsub.s32 1, %v887
    %v889 = vrot.slane %v880, %v888
    %v890 = vlaneseq
    %v891 = vshrl.u32 %v890, 7
    %v892 = vsub.s32 2, %v891
    %v893 = vrot.slane %v880, %v892
    %v929 = vunpack.c.l.b16 %v848
    %v930 = vunpack.c.h.b16 %v848
    %v931 = vunpack.c.l.b16 %v849
    %v932 = vunpack.c.l.b16 %v850
    %v933 = vunpack.c.h.b16 %v850
    %v934 = vunpack.c.l.b16 %v851
    %v935 = vunpack.c.l.b16 %v852
    %v936 = vunpack.c.h.b16 %v852
    %v937 = vunpack.c.l.b16 %v853
    %v938 = vunpack.c.l.b16 %v854
    %v939 = vunpack.c.h.b16 %v854
    %v940 = vunpack.c.l.b16 %v855
    %v941 = vunpack.c.l.b16 %v856
    %v942 = vunpack.c.h.b16 %v856
    %v943 = vunpack.c.l.b16 %v857
    %v944 = vunpack.c.l.b16 %v858
    %v945 = vunpack.c.h.b16 %v858
    %v946 = vunpack.c.l.b16 %v859
    %v947 = vunpack.c.l.b16 %v860
    %v948 = vunpack.c.h.b16 %v860
    %v949 = vunpack.c.l.b16 %v861
    %v950 = vunpack.c.l.b16 %v862
    %v951 = vunpack.c.h.b16 %v862
    %v952 = vunpack.c.l.b16 %v863
    %v953 = vunpack.c.l.b16 %v864
    %v954 = vunpack.c.h.b16 %v864
    %v955 = vunpack.c.l.b16 %v865
    %v956 = vunpack.c.l.b16 %v866
    %v957 = vunpack.c.h.b16 %v866
    %v958 = vunpack.c.l.b16 %v867
    %v959 = vunpack.c.l.b16 %v868
    %v960 = vunpack.c.h.b16 %v868
    %v961 = vunpack.c.l.b16 %v869
    %v962 = vunpack.c.l.b16 %v870
    %v963 = vunpack.c.h.b16 %v870
    %v964 = vunpack.c.l.b16 %v871
    %v965 = vunpack.c.l.b16 %v872
    %v966 = vunpack.c.h.b16 %v872
    %v967 = vunpack.c.l.b16 %v873
    %v968 = vunpack.c.l.b16 %v874
    %v969 = vunpack.c.h.b16 %v874
    %v970 = vunpack.c.l.b16 %v875
    %v971 = vunpack.c.l.b16 %v876
    %v972 = vunpack.c.h.b16 %v876
    %v973 = vunpack.c.l.b16 %v877
    %v974 = vunpack.c.l.b16 %v878
    %v975 = vunpack.c.h.b16 %v878
    %v976 = vunpack.c.l.b16 %v879
    %v977 = vpack.c.b16 %v932, %v929
    %v978 = vpack.c.b16 %v933, %v930
    %v979 = vpack.c.b16 %v934, %v931
    %v980 = vpack.c.b16 %v938, %v935
    %v981 = vpack.c.b16 %v939, %v936
    %v982 = vpack.c.b16 %v940, %v937
    %v983 = vpack.c.b16 %v944, %v941
    %v984 = vpack.c.b16 %v945, %v942
    %v985 = vpack.c.b16 %v946, %v943
    %v986 = vpack.c.b16 %v950, %v947
    %v987 = vpack.c.b16 %v951, %v948
    %v988 = vpack.c.b16 %v952, %v949
    %v989 = vpack.c.b16 %v956, %v953
    %v990 = vpack.c.b16 %v957, %v954
    %v991 = vpack.c.b16 %v958, %v955
    %v992 = vpack.c.b16 %v962, %v959
    %v993 = vpack.c.b16 %v963, %v960
    %v994 = vpack.c.b16 %v964, %v961
    %v995 = vpack.c.b16 %v968, %v965
    %v996 = vpack.c.b16 %v969, %v966
    %v997 = vpack.c.b16 %v970, %v967
    %v998 = vpack.c.b16 %v974, %v971
    %v999 = vpack.c.b16 %v975, %v972
    %v1000 = vpack.c.b16 %v976, %v973
    %1025 = vmatprep.subr.bf16.mxu0 %v978
    %1026 = vmatpush1.bf16.msra.mxu0 %v977
    %1027 = vmatprep.subr.bf16.mxu0 %v981
    %1028 = vmatpush1.bf16.msra.mxu0 %v980
    %1029 = vmatprep.subr.bf16.mxu0 %v984
    %1030 = vmatpush1.bf16.msra.mxu0 %v983
    %1031 = vmatprep.subr.bf16.mxu0 %v987
    %1032 = vmatpush1.bf16.msra.mxu0 %v986
    %1033 = vmatprep.subr.bf16.mxu0 %v990
    %1034 = vmatpush1.bf16.msra.mxu0 %v989
    %1035 = vmatprep.subr.bf16.mxu0 %v993
    %1036 = vmatpush1.bf16.msra.mxu0 %v992
    %1037 = vmatprep.subr.bf16.mxu0 %v996
    %1038 = vmatpush1.bf16.msra.mxu0 %v995
    %1039 = vmatprep.subr.bf16.mxu0 %v999
    %1040 = vmatpush1.bf16.msra.mxu0 %v998
    %1041 = vmatprep.subr.bf16.mxu0 0
    %1042 = vmatpush1.bf16.msra.mxu0 0
    %1043 = vmatprep.subr.bf16.mxu0 0
    %1044 = vmatpush1.bf16.msra.mxu0 0
    %1045 = vmatprep.subr.bf16.mxu0 0
    %1046 = vmatpush1.bf16.msra.mxu0 0
    %1047 = vmatprep.subr.bf16.mxu0 0
    %1048 = vmatpush1.bf16.msra.mxu0 0
    %1049 = vmatprep.subr.bf16.mxu0 0
    %1050 = vmatpush1.bf16.msra.mxu0 0
    %1051 = vmatprep.subr.bf16.mxu0 0
    %1052 = vmatpush1.bf16.msra.mxu0 0
    %1053 = vmatprep.subr.bf16.mxu0 0
    %1054 = vmatpush1.bf16.msra.mxu0 0
    %1055 = vmatprep.subr.bf16.mxu0 0
    %1056 = vmatpush1.bf16.msra.mxu0 0
    %1057 = vmatprep.mubr.bf16.mxu0 0
    %1058 = vmatmul.mubr.bf16.gmra.mrb[0].mxu0 %v847
    %v1059 = vpop.f32.mrb[0].mxu0
    %v1060 = vadd.f32 %v885, %v1059
    %v1061 = vpop.f32.mrb[0].mxu0
    %v1062 = vadd.f32 %v889, %v1061
    %v1063 = vpop.f32.mrb[0].mxu0
    %v1064 = vadd.f32 %v885, %v1063
    %v1065 = vpop.f32.mrb[0].mxu0
    %v1066 = vadd.f32 %v889, %v1065
    %1067 = vdwg.mxu0
    %1068 = vmatprep.subr.bf16.mxu0 0
    %1069 = vmatpush1.bf16.msra.mxu0 %v979
    %1070 = vmatprep.subr.bf16.mxu0 0
    %1071 = vmatpush1.bf16.msra.mxu0 %v982
    %1072 = vmatprep.subr.bf16.mxu0 0
    %1073 = vmatpush1.bf16.msra.mxu0 %v985
    %1074 = vmatprep.subr.bf16.mxu0 0
    %1075 = vmatpush1.bf16.msra.mxu0 %v988
    %1076 = vmatprep.subr.bf16.mxu0 0
    %1077 = vmatpush1.bf16.msra.mxu0 %v991
    %1078 = vmatprep.subr.bf16.mxu0 0
    %1079 = vmatpush1.bf16.msra.mxu0 %v994
    %1080 = vmatprep.subr.bf16.mxu0 0
    %1081 = vmatpush1.bf16.msra.mxu0 %v997
    %1082 = vmatprep.subr.bf16.mxu0 0
    %1083 = vmatpush1.bf16.msra.mxu0 %v1000
    %1084 = vmatprep.subr.bf16.mxu0 0
    %1085 = vmatpush1.bf16.msra.mxu0 0
    %1086 = vmatprep.subr.bf16.mxu0 0
    %1087 = vmatpush1.bf16.msra.mxu0 0
    %1088 = vmatprep.subr.bf16.mxu0 0
    %1089 = vmatpush1.bf16.msra.mxu0 0
    %1090 = vmatprep.subr.bf16.mxu0 0
    %1091 = vmatpush1.bf16.msra.mxu0 0
    %1092 = vmatprep.subr.bf16.mxu0 0
    %1093 = vmatpush1.bf16.msra.mxu0 0
    %1094 = vmatprep.subr.bf16.mxu0 0
    %1095 = vmatpush1.bf16.msra.mxu0 0
    %1096 = vmatprep.subr.bf16.mxu0 0
    %1097 = vmatpush1.bf16.msra.mxu0 0
    %1098 = vmatprep.subr.bf16.mxu0 0
    %1099 = vmatpush1.bf16.msra.mxu0 0
    %1100 = vmatprep.mubr.bf16.mxu0 0
    %1101 = vmatmul.mubr.bf16.gmra.mrb[0].mxu0 %v847
    %v1102 = vpop.f32.mrb[0].mxu0
    %v1103 = vadd.f32 %v893, %v1102
    %v1104 = vpop.f32.mrb[0].mxu0
    %v1105 = vpop.f32.mrb[0].mxu0
    %v1106 = vadd.f32 %v893, %v1105
    %v1107 = vpop.f32.mrb[0].mxu0
    %1108 = vdwg.mxu0
    %1109 = vst [vmem:[#allocation10] sm:$0xff] %v1060
    %1110 = vst [vmem:[#allocation10 + $0x8] sm:$0xff] %v1062
    %1111 = vst [vmem:[#allocation10 + $0x10] sm:$0xff] %v1103
    %1112 = vst [vmem:[#allocation10 + $0x18] sm:$0xff] %v1064
    %1113 = vst [vmem:[#allocation10 + $0x20] sm:$0xff] %v1066
    %1114 = vst [vmem:[#allocation10 + $0x28] sm:$0xff] %v1106
    // Predicated region
    $region46: #{tpu_custom_call.1} parent=1 // pred_check
      _
    $region47: #{tpu_custom_call.1} parent=1 // pred_check_branch
      %1116 = sbr.rel (0) target = $region49
    $region48: #{tpu_custom_call.1} parent=1 // pred_region
      %s1118 = ssub.s32 768, 768
      %1119 = vsyncadd [#allocation4], %s1118
      %s1120 = sshll.u32 [#allocation10], 4
      %s1121 = int_to_ptr.vmem [resolvable:$true] %s1120
      %1126 = dma.vmem_to_hbm [thread:$0]  %s1121, 768, %s7, [#allocation4], 384, 384, 24
    $region49: #{tpu_custom_call.1} parent=1 // pred_fallthru
      _
    // Predicated region
    $region50: #{tpu_custom_call.1} parent=1 // pred_check
      _
    $region51: #{tpu_custom_call.1} parent=1 // pred_check_branch
      %1128 = sbr.rel (0) target = $region53
    $region52: #{tpu_custom_call.1} parent=1 // pred_region
      %1129 = dma.done [#allocation4], 768
    $region53: #{tpu_custom_call.1} parent=1 // pred_fallthru
      _
    %1130 = vsyncpa [#allocation3], 1
    %1131 = vsyncpa [#allocation6], 1
    %1132 = vsyncpa [#allocation9], 1
    %1133 = vsyncpa [#allocation4], 1

</llo_original>
